<compile_context>
chip_gen: v7x
topology: tpu7x:2x2x1
jax: 0.10.0
libtpu: 0.0.40
codegen_flags: <defaults>
</compile_context>

<pallas_src>
import functools
import math

import jax
import jax.numpy as jnp
from jax.experimental import pallas as pl
from jax.experimental.pallas import tpu as pltpu


# ----------------------------------------------------------------------------
# tiling helper
# ----------------------------------------------------------------------------
def _tile(dim, cap, align):
    """Largest tile <= cap that is a multiple of `align` and divides `dim`
    (falls back to the full dim, which always satisfies the (8,128) rule)."""
    if dim <= cap:
        return dim
    t = (cap // align) * align
    while t >= align:
        if dim % t == 0:
            return t
        t -= align
    return dim


# ----------------------------------------------------------------------------
# tiled linear: x[M,K] @ w[K,N] + b  (optional GELU), f32 accumulation in VMEM
# ----------------------------------------------------------------------------
def _linear_kernel(x_ref, w_ref, b_ref, o_ref, acc_ref, *, activation, n_k):
    @pl.when(pl.program_id(2) == 0)
    def _():
        acc_ref[...] = jnp.zeros_like(acc_ref)

    acc_ref[...] += jnp.dot(x_ref[...].astype(jnp.bfloat16), w_ref[...],
                            preferred_element_type=jnp.float32)

    @pl.when(pl.program_id(2) == n_k - 1)
    def _():
        out = acc_ref[...] + b_ref[...].astype(jnp.float32)
        if activation == "gelu":
            # TODO(synk): PyTorch nn.GELU default is exact erf; tanh approx used
            # here (EUP-friendly, guaranteed to lower in Mosaic).
            out = jax.nn.gelu(out)
        o_ref[...] = out.astype(o_ref.dtype)


def pallas_linear(x, w, b, activation=None, tm_cap=256, tn_cap=512, tk_cap=512):
    """x: [M,K] f32, w: [K,N] bf16, b: [N] f32 -> [M,N] f32."""
    M, K = x.shape
    N = w.shape[1]
    tm = _tile(M, tm_cap, 8)
    tn = _tile(N, tn_cap, 128)
    tk = _tile(K, tk_cap, 128)
    n_k = K // tk
    return pl.pallas_call(
        functools.partial(_linear_kernel, activation=activation, n_k=n_k),
        grid=(M // tm, N // tn, n_k),
        in_specs=[pl.BlockSpec((tm, tk), lambda i, j, k: (i, k)),
                  pl.BlockSpec((tk, tn), lambda i, j, k: (k, j)),
                  pl.BlockSpec((1, tn), lambda i, j, k: (0, j))],
        out_specs=pl.BlockSpec((tm, tn), lambda i, j, k: (i, j)),
        out_shape=jax.ShapeDtypeStruct((M, N), jnp.float32),
        scratch_shapes=[pltpu.VMEM((tm, tn), jnp.float32)],
        compiler_params=pltpu.CompilerParams(
            dimension_semantics=("parallel", "parallel", "arbitrary")),
    )(x, w, b.reshape(1, N))


# ----------------------------------------------------------------------------
# fused embedding: LayerNorm(tok + seg + pos)       [B,S,H] -> [B*S, H]
# ----------------------------------------------------------------------------
def _embed_ln_kernel(tok_ref, seg_ref, pos_ref, g_ref, b_ref, o_ref, *, eps):
    x = (tok_ref[0].astype(jnp.float32) + seg_ref[0].astype(jnp.float32)
         + pos_ref[0].astype(jnp.float32))
    mu = jnp.mean(x, axis=-1, keepdims=True)
    var = jnp.mean(jnp.square(x - mu), axis=-1, keepdims=True)
    y = (x - mu) * jax.lax.rsqrt(var + eps)
    o_ref[...] = (y * g_ref[...] + b_ref[...]).astype(o_ref.dtype)


def pallas_embed_ln(tok, seg, pos, gamma, beta, eps=1e-12):
    B, S, H = tok.shape
    return pl.pallas_call(
        functools.partial(_embed_ln_kernel, eps=eps),
        grid=(B,),
        in_specs=[pl.BlockSpec((1, S, H), lambda b: (b, 0, 0)),
                  pl.BlockSpec((1, S, H), lambda b: (b, 0, 0)),
                  pl.BlockSpec((1, S, H), lambda b: (0, 0, 0)),
                  pl.BlockSpec((1, H), lambda b: (0, 0)),
                  pl.BlockSpec((1, H), lambda b: (0, 0))],
        out_specs=pl.BlockSpec((S, H), lambda b: (b, 0)),
        out_shape=jax.ShapeDtypeStruct((B * S, H), jnp.float32),
        compiler_params=pltpu.CompilerParams(dimension_semantics=("parallel",)),
    )(tok, seg, pos, gamma.reshape(1, H), beta.reshape(1, H))


# ----------------------------------------------------------------------------
# fused multi-head attention: one grid step = one batch element, all heads.
# qkv slab [B*S, 3H] is indexed directly (no XLA reshape/transpose); the [B,1,S]
# mask bias is broadcast in-kernel; ctx is written lane-dense as [B*S, H].
# ----------------------------------------------------------------------------
def _attention_kernel(qkv_ref, bias_ref, ctx_ref, attw_ref, *, nH, dh, scale):
    H = nH * dh
    qkv = qkv_ref[...]                     # [S, 3H] f32
    bias = bias_ref[0]                     # [1, S]  additive mask bias
    for h in range(nH):                    # static unroll over heads
        qh = qkv[:, h * dh:(h + 1) * dh].astype(jnp.bfloat16)          # [S,dh]
        kh = qkv[:, H + h * dh:H + (h + 1) * dh].astype(jnp.bfloat16)  # [S,dh]
        vh = qkv[:, 2 * H + h * dh:2 * H + (h + 1) * dh].astype(jnp.bfloat16)
        s = jax.lax.dot_general(qh, kh, (((1,), (1,)), ((), ())),
                                preferred_element_type=jnp.float32)    # [S,S]
        s = s * scale + bias
        s = s - jnp.max(s, axis=-1, keepdims=True)
        p = jnp.exp(s)
        p = p * pl.reciprocal(jnp.sum(p, axis=-1, keepdims=True), approx=True)
        attw_ref[0, h] = p.astype(attw_ref.dtype)
        ctx = jax.lax.dot_general(p.astype(jnp.bfloat16), vh,
                                  (((1,), (0,)), ((), ())),
                                  preferred_element_type=jnp.float32)  # [S,dh]
        ctx_ref[:, h * dh:(h + 1) * dh] = ctx.astype(ctx_ref.dtype)


def pallas_attention(qkv, bias, *, B, S, nH, dh, scale):
    """qkv: [B*S, 3H] f32, bias: [B,1,S] f32 -> (ctx [B*S,H] f32, attw [B,nH,S,S] bf16)."""
    H = nH * dh
    return pl.pallas_call(
        functools.partial(_attention_kernel, nH=nH, dh=dh, scale=scale),
        grid=(B,),
        in_specs=[pl.BlockSpec((S, 3 * H), lambda b: (b, 0)),
                  pl.BlockSpec((1, 1, S), lambda b: (b, 0, 0))],
        out_specs=[pl.BlockSpec((S, H), lambda b: (b, 0)),
                   pl.BlockSpec((1, nH, S, S), lambda b: (b, 0, 0, 0))],
        out_shape=(jax.ShapeDtypeStruct((B * S, H), jnp.float32),
                   jax.ShapeDtypeStruct((B, nH, S, S), jnp.bfloat16)),
        compiler_params=pltpu.CompilerParams(dimension_semantics=("parallel",)),
    )(qkv, bias)


# ----------------------------------------------------------------------------
# fused: x @ Wo + bo + residual -> LayerNorm     (attention output block)
# ----------------------------------------------------------------------------
def _proj_residual_ln_kernel(x_ref, w_ref, b_ref, res_ref, g_ref, bt_ref, o_ref, *, eps):
    y = jnp.dot(x_ref[...].astype(jnp.bfloat16), w_ref[...],
                preferred_element_type=jnp.float32)
    y = y + b_ref[...] + res_ref[...].astype(jnp.float32)
    mu = jnp.mean(y, axis=-1, keepdims=True)
    var = jnp.mean(jnp.square(y - mu), axis=-1, keepdims=True)
    z = (y - mu) * jax.lax.rsqrt(var + eps)
    o_ref[...] = (z * g_ref[...] + bt_ref[...]).astype(o_ref.dtype)


def pallas_proj_residual_ln(x, w, b, res, gamma, beta, eps=1e-12, tm_cap=256):
    M, K = x.shape
    N = w.shape[1]
    tm = _tile(M, tm_cap, 8)
    return pl.pallas_call(
        functools.partial(_proj_residual_ln_kernel, eps=eps),
        grid=(M // tm,),
        in_specs=[pl.BlockSpec((tm, K), lambda i: (i, 0)),
                  pl.BlockSpec((K, N), lambda i: (0, 0)),
                  pl.BlockSpec((1, N), lambda i: (0, 0)),
                  pl.BlockSpec((tm, N), lambda i: (i, 0)),
                  pl.BlockSpec((1, N), lambda i: (0, 0)),
                  pl.BlockSpec((1, N), lambda i: (0, 0))],
        out_specs=pl.BlockSpec((tm, N), lambda i: (i, 0)),
        out_shape=jax.ShapeDtypeStruct((M, N), jnp.float32),
        compiler_params=pltpu.CompilerParams(dimension_semantics=("parallel",)),
    )(x, w, b.reshape(1, N), res, gamma.reshape(1, N), beta.reshape(1, N))


# ----------------------------------------------------------------------------
# fused FFN: GELU(x @ W1 + b1) @ W2 + b2 + residual -> LayerNorm
# ----------------------------------------------------------------------------
def _ffn_residual_ln_kernel(x_ref, w1_ref, b1_ref, w2_ref, b2_ref, g_ref, bt_ref,
                            o_ref, *, eps):
    x = x_ref[...]
    h = jnp.dot(x.astype(jnp.bfloat16), w1_ref[...],
                preferred_element_type=jnp.float32) + b1_ref[...]
    # TODO(synk): PyTorch nn.GELU default is exact erf; tanh approx used here.
    h = jax.nn.gelu(h)
    y = jnp.dot(h.astype(jnp.bfloat16), w2_ref[...],
                preferred_element_type=jnp.float32) + b2_ref[...]
    y = y + x.astype(jnp.float32)
    mu = jnp.mean(y, axis=-1, keepdims=True)
    var = jnp.mean(jnp.square(y - mu), axis=-1, keepdims=True)
    z = (y - mu) * jax.lax.rsqrt(var + eps)
    o_ref[...] = (z * g_ref[...] + bt_ref[...]).astype(o_ref.dtype)


def pallas_ffn_residual_ln(x, w1, b1, w2, b2, gamma, beta, eps=1e-12, tm_cap=256):
    M, H = x.shape
    F = w1.shape[1]
    tm = _tile(M, tm_cap, 8)
    return pl.pallas_call(
        functools.partial(_ffn_residual_ln_kernel, eps=eps),
        grid=(M // tm,),
        in_specs=[pl.BlockSpec((tm, H), lambda i: (i, 0)),
                  pl.BlockSpec((H, F), lambda i: (0, 0)),
                  pl.BlockSpec((1, F), lambda i: (0, 0)),
                  pl.BlockSpec((F, H), lambda i: (0, 0)),
                  pl.BlockSpec((1, H), lambda i: (0, 0)),
                  pl.BlockSpec((1, H), lambda i: (0, 0)),
                  pl.BlockSpec((1, H), lambda i: (0, 0))],
        out_specs=pl.BlockSpec((tm, H), lambda i: (i, 0)),
        out_shape=jax.ShapeDtypeStruct((M, H), jnp.float32),
        compiler_params=pltpu.CompilerParams(dimension_semantics=("parallel",)),
    )(x, w1, b1.reshape(1, F), w2, b2.reshape(1, H),
      gamma.reshape(1, H), beta.reshape(1, H))


# ----------------------------------------------------------------------------
# Parameter construction (deterministic, synthetic).  Matmul weights are kept
# in bf16 (MXU/HBM efficient); biases, LN params, embeddings stay f32.
# ----------------------------------------------------------------------------
CFG = dict(
    vocab=64, hidden=32, heads=2, ffn=64, layers=2, max_len=32,
    segments=2, nsp_classes=2, task_classes=3, input_names=("token",),
)


def init_params(key, cfg=CFG):
    V, H, F = cfg["vocab"], cfg["hidden"], cfg["ffn"]
    ks = iter(jax.random.split(key, 64))
    nrm = lambda shape: 0.02 * jax.random.normal(next(ks), shape, jnp.float32)
    nrmb = lambda shape: nrm(shape).astype(jnp.bfloat16)   # bf16 matmul weights
    p = {
        "tok_emb": nrm((V, H)),
        "seg_emb": nrm((cfg["segments"], H)),
        "pos_emb": nrm((cfg["max_len"], H)),
        "emb_ln_g": jnp.ones((H,), jnp.float32),
        "emb_ln_b": jnp.zeros((H,), jnp.float32),
        "nsp_w": nrm((H, cfg["nsp_classes"])),
        "nsp_b": jnp.zeros((cfg["nsp_classes"],), jnp.float32),
        "task_w": nrm((H, cfg["task_classes"])),
        "task_b": jnp.zeros((cfg["task_classes"],), jnp.float32),
        "mlm": {name: {"w": nrmb((H, V)), "b": jnp.zeros((V,), jnp.float32)}
                for name in cfg["input_names"]},
        "layers": [],
    }
    for _ in range(cfg["layers"]):
        p["layers"].append({
            "wqkv": nrmb((H, 3 * H)), "bqkv": jnp.zeros((3 * H,), jnp.float32),
            "wo": nrmb((H, H)), "bo": jnp.zeros((H,), jnp.float32),
            "ln1_g": jnp.ones((H,), jnp.float32), "ln1_b": jnp.zeros((H,), jnp.float32),
            "w1": nrmb((H, F)), "b1": jnp.zeros((F,), jnp.float32),
            "w2": nrmb((F, H)), "b2": jnp.zeros((H,), jnp.float32),
            "ln2_g": jnp.ones((H,), jnp.float32), "ln2_b": jnp.zeros((H,), jnp.float32),
        })
    return p


# ----------------------------------------------------------------------------
# Forward pass (mirrors BertLanguageModel.forward; batch-first internal layout)
# ----------------------------------------------------------------------------
def bert_language_model_forward(params, src, segment_info=None, src_mask=None, cfg=CFG):
    """src, segment_info: [B, S] int32.  Returns the 5-tuple of the PyTorch module."""
    B, S = src.shape
    H, nH = cfg["hidden"], cfg["heads"]
    dh = H // nH

    # ---- embedding_layer: LN(tok + seg + pos) --------------------------------
    if segment_info is None:
        segment_info = jnp.zeros_like(src)
    tok = jnp.take(params["tok_emb"], src, axis=0)                     # [B,S,H]
    seg = jnp.take(params["seg_emb"], segment_info, axis=0)            # [B,S,H]
    pos = params["pos_emb"][:S][None]                                  # [1,S,H]
    x2 = pallas_embed_ln(tok, seg, pos, params["emb_ln_g"], params["emb_ln_b"])  # [B*S,H]

    # ---- attention mask bias: [B,1,S], broadcast inside the kernel -----------
    if src_mask is None:
        bias = jnp.zeros((B, 1, S), jnp.float32)
    else:  # src_mask: [B, S] with 1 = keep, 0 = masked key
        bias = ((1.0 - src_mask.astype(jnp.float32)) * -1e9)[:, None, :]

    # ---- bert_encoder ---------------------------------------------------------
    attn_weights_per_layer = []
    scale = 1.0 / math.sqrt(dh)
    for layer in params["layers"]:
        h2 = x2                                                         # [B*S, H]
        qkv = pallas_linear(h2, layer["wqkv"], layer["bqkv"])           # [B*S, 3H]
        ctx, attw = pallas_attention(qkv, bias, B=B, S=S, nH=nH, dh=dh, scale=scale)
        attn_weights_per_layer.append(attw)                            # [B,nH,S,S] bf16
        x2 = pallas_proj_residual_ln(ctx, layer["wo"], layer["bo"], h2,
                                     layer["ln1_g"], layer["ln1_b"])    # [B*S, H]
        x2 = pallas_ffn_residual_ln(x2, layer["w1"], layer["b1"],
                                    layer["w2"], layer["b2"],
                                    layer["ln2_g"], layer["ln2_b"])     # [B*S, H]

    enc_bsh = x2.reshape(B, S, H)            # == encoder_output.permute(1,0,2)
    attention_weights = jnp.stack(attn_weights_per_layer, axis=0)       # [L,B,nH,S,S]

    # ---- nsp_decoder / task_decoder on encoder_output[0] (CLS row) -----------
    cls = enc_bsh[:, 0, :]                                               # [B,H]
    head_w = jnp.concatenate([params["nsp_w"], params["task_w"]], axis=1)
    head_b = jnp.concatenate([params["nsp_b"], params["task_b"]], axis=0)
    heads = cls @ head_w + head_b            # tiny N=5 head: plain jnp (no kernel)
    nsp_output = heads[:, :cfg["nsp_classes"]]
    task_output = heads[:, cfg["nsp_classes"]:]

    # ---- mlm_decoder[name](encoder_output).permute(1,0,2) ---------------------
    mlm_outputs = {}
    for name in cfg["input_names"]:
        head = params["mlm"][name]
        mlm = pallas_linear(x2, head["w"], head["b"])                    # [B*S, V]
        mlm_outputs[name] = mlm.reshape(B, S, -1)                        # [B,S,V]

    # TODO(synk): dropout in embedding/encoder is omitted (inference semantics).
    return (enc_bsh, nsp_output, mlm_outputs, task_output, attention_weights)


# ----------------------------------------------------------------------------
if __name__ == "__main__":
    key = jax.random.PRNGKey(0)
    k_param, k_src, k_seg = jax.random.split(key, 3)

    B, S = 2, 8
    params = init_params(k_param)
    src = jax.random.randint(k_src, (B, S), 0, CFG["vocab"], dtype=jnp.int32)
    segment_info = jax.random.randint(k_seg, (B, S), 0, CFG["segments"], dtype=jnp.int32)

    outs = bert_language_model_forward(params, src, segment_info, src_mask=None)
    enc, nsp, mlm, task, attw = jax.block_until_ready(outs)

    assert enc.shape == (B, S, CFG["hidden"])
    assert nsp.shape == (B, CFG["nsp_classes"])
    assert mlm["token"].shape == (B, S, CFG["vocab"])
    assert task.shape == (B, CFG["task_classes"])
    assert attw.shape == (CFG["layers"], B, CFG["heads"], S, S)
    print("KERNEL_OK")
</pallas_src>

<mosaic_0001>
module attributes {stable_mosaic.version = 11 : i64} {
  func.func @_embed_ln_kernel(%arg0: i32, %arg1: memref<1x8x32xf32, #tpu.memory_space<vmem>>, %arg2: memref<1x8x32xf32, #tpu.memory_space<vmem>>, %arg3: memref<1x8x32xf32, #tpu.memory_space<vmem>>, %arg4: memref<1x32xf32, #tpu.memory_space<vmem>>, %arg5: memref<1x32xf32, #tpu.memory_space<vmem>>, %arg6: memref<8x32xf32, #tpu.memory_space<vmem>>) attributes {dimension_semantics = [#tpu.dimension_semantics<parallel>], iteration_bounds = array<i64: 2>, scalar_prefetch = 0 : i64, scratch_operands = 0 : i64, tpu.core_type = #tpu.core_type<tc>, window_params = [{transform_indices = @transform_0, window_bounds = array<i64: 1, 8, 32>}, {transform_indices = @transform_1, window_bounds = array<i64: 1, 8, 32>}, {pipeline_mode = #tpu.pipeline_mode<synchronous>, transform_indices = @transform_2, window_bounds = array<i64: 1, 8, 32>}, {pipeline_mode = #tpu.pipeline_mode<synchronous>, transform_indices = @transform_3, window_bounds = array<i64: 1, 32>}, {pipeline_mode = #tpu.pipeline_mode<synchronous>, transform_indices = @transform_4, window_bounds = array<i64: 1, 32>}, {transform_indices = @transform_5, window_bounds = array<i64: 8, 32>}]} {
    %c0 = arith.constant 0 : index
    %c0_0 = arith.constant 0 : index
    %c0_1 = arith.constant 0 : index
    %0 = vector.load %arg1[%c0, %c0_0, %c0_1] : memref<1x8x32xf32, #tpu.memory_space<vmem>>, vector<1x8x32xf32>
    %1 = vector.shape_cast %0 : vector<1x8x32xf32> to vector<8x32xf32>
    %c0_2 = arith.constant 0 : index
    %c0_3 = arith.constant 0 : index
    %c0_4 = arith.constant 0 : index
    %2 = vector.load %arg2[%c0_2, %c0_3, %c0_4] : memref<1x8x32xf32, #tpu.memory_space<vmem>>, vector<1x8x32xf32>
    %3 = vector.shape_cast %2 : vector<1x8x32xf32> to vector<8x32xf32>
    %4 = arith.addf %1, %3 : vector<8x32xf32>
    %c0_5 = arith.constant 0 : index
    %c0_6 = arith.constant 0 : index
    %c0_7 = arith.constant 0 : index
    %5 = vector.load %arg3[%c0_5, %c0_6, %c0_7] : memref<1x8x32xf32, #tpu.memory_space<vmem>>, vector<1x8x32xf32>
    %6 = vector.shape_cast %5 : vector<1x8x32xf32> to vector<8x32xf32>
    %7 = arith.addf %4, %6 : vector<8x32xf32>
    %cst = arith.constant dense<0.000000e+00> : vector<8xf32>
    %8 = vector.multi_reduction <add>, %7, %cst [1] : vector<8x32xf32> to vector<8xf32>
    %9 = vector.shape_cast %8 : vector<8xf32> to vector<8x1xf32>
    %cst_8 = arith.constant 3.200000e+01 : f32
    %10 = vector.broadcast %cst_8 : f32 to vector<8x1xf32>
    %11 = arith.divf %9, %10 : vector<8x1xf32>
    %12 = vector.broadcast %11 : vector<8x1xf32> to vector<8x32xf32>
    %13 = arith.subf %7, %12 : vector<8x32xf32>
    %14 = arith.mulf %13, %13 : vector<8x32xf32>
    %cst_9 = arith.constant dense<0.000000e+00> : vector<8xf32>
    %15 = vector.multi_reduction <add>, %14, %cst_9 [1] : vector<8x32xf32> to vector<8xf32>
    %16 = vector.shape_cast %15 : vector<8xf32> to vector<8x1xf32>
    %cst_10 = arith.constant 3.200000e+01 : f32
    %17 = vector.broadcast %cst_10 : f32 to vector<8x1xf32>
    %18 = arith.divf %16, %17 : vector<8x1xf32>
    %19 = vector.broadcast %11 : vector<8x1xf32> to vector<8x32xf32>
    %20 = arith.subf %7, %19 : vector<8x32xf32>
    %cst_11 = arith.constant 9.99999996E-13 : f32
    %21 = vector.broadcast %cst_11 : f32 to vector<8x1xf32>
    %22 = arith.addf %18, %21 : vector<8x1xf32>
    %23 = math.rsqrt %22 : vector<8x1xf32>
    %24 = vector.broadcast %23 : vector<8x1xf32> to vector<8x32xf32>
    %25 = arith.mulf %20, %24 : vector<8x32xf32>
    %c0_12 = arith.constant 0 : index
    %c0_13 = arith.constant 0 : index
    %26 = vector.load %arg4[%c0_12, %c0_13] : memref<1x32xf32, #tpu.memory_space<vmem>>, vector<1x32xf32>
    %27 = vector.broadcast %26 : vector<1x32xf32> to vector<8x32xf32>
    %28 = arith.mulf %25, %27 : vector<8x32xf32>
    %c0_14 = arith.constant 0 : index
    %c0_15 = arith.constant 0 : index
    %29 = vector.load %arg5[%c0_14, %c0_15] : memref<1x32xf32, #tpu.memory_space<vmem>>, vector<1x32xf32>
    %30 = vector.broadcast %29 : vector<1x32xf32> to vector<8x32xf32>
    %31 = arith.addf %28, %30 : vector<8x32xf32>
    %c0_16 = arith.constant 0 : index
    %c0_17 = arith.constant 0 : index
    %32 = vector.load %arg6[%c0_16, %c0_17] : memref<8x32xf32, #tpu.memory_space<vmem>>, vector<8x32xf32>
    tpu.vector_store %arg6[%c0_16, %c0_17], %31 {strides = array<i32>} : memref<8x32xf32, #tpu.memory_space<vmem>>, vector<8x32xf32>,
    return
  }
  func.func @transform_0(%arg0: i32) -> (i32, i32, i32) {
    %c0_i32 = arith.constant 0 : i32
    %c0_i32_0 = arith.constant 0 : i32
    %c0_i32_1 = arith.constant 0 : i32
    return %arg0, %c0_i32, %c0_i32_0 : i32, i32, i32
  }
  func.func @transform_1(%arg0: i32) -> (i32, i32, i32) {
    %c0_i32 = arith.constant 0 : i32
    %c0_i32_0 = arith.constant 0 : i32
    %c0_i32_1 = arith.constant 0 : i32
    return %arg0, %c0_i32, %c0_i32_0 : i32, i32, i32
  }
  func.func @transform_2(%arg0: i32) -> (i32, i32, i32) {
    %c0_i32 = arith.constant 0 : i32
    %c0_i32_0 = arith.constant 0 : i32
    %c0_i32_1 = arith.constant 0 : i32
    %c0_i32_2 = arith.constant 0 : i32
    return %c0_i32, %c0_i32_0, %c0_i32_1 : i32, i32, i32
  }
  func.func @transform_3(%arg0: i32) -> (i32, i32) {
    %c0_i32 = arith.constant 0 : i32
    %c0_i32_0 = arith.constant 0 : i32
    %c0_i32_1 = arith.constant 0 : i32
    return %c0_i32, %c0_i32_0 : i32, i32
  }
  func.func @transform_4(%arg0: i32) -> (i32, i32) {
    %c0_i32 = arith.constant 0 : i32
    %c0_i32_0 = arith.constant 0 : i32
    %c0_i32_1 = arith.constant 0 : i32
    return %c0_i32, %c0_i32_0 : i32, i32
  }
  func.func @transform_5(%arg0: i32) -> (i32, i32) {
    %c0_i32 = arith.constant 0 : i32
    %c0_i32_0 = arith.constant 0 : i32
    return %arg0, %c0_i32 : i32, i32
  }
}

</mosaic_0001>

<llo_original>
// kernel: tpu_custom_call.1
$region0: #{tpu_custom_call.1}
  #allocation0 [shape = 'u32[]', space=smem, size = 0x4, offset = 0x4, fixed_abs, tag = 'smem constant byte address 0x4 - core index']
  #allocation1 [shape = 'u32[144,128]{1,0:T(1,128)}', space=vmem, size = 0x12000, scoped, tag = 'internal scratch']
  %s0 = inlined_call_operand.hbm [shape: f32[2,8,32], index: 0, kind: input, shape index: {}]
  %s1 = inlined_call_operand.hbm [shape: f32[2,8,32], index: 1, kind: input, shape index: {}]
  %s2 = inlined_call_operand.hbm [shape: f32[1,8,32], index: 2, kind: input, shape index: {}]
  %s3 = inlined_call_operand.vmem [shape: f32[1,32], index: 3, kind: input, shape index: {}]
  %s4 = inlined_call_operand.vmem [shape: f32[1,32], index: 4, kind: input, shape index: {}]
  %s5 = inlined_call_operand.hbm [shape: f32[16,32], index: 5, kind: output, shape index: {}]
  %s6 = sld [smem:[#allocation0]]
  $region65: #{tpu_custom_call.1} parent=0
    _
  %s8 = ssub.s32 1, %s6
  %s9 = scalar_select 0, %s8, %s6
  $region1: #{tpu_custom_call.1} parent=0
    #allocation2 [shape = 'u8[8192]{0}', space=vmem, size = 0x2000, scoped, tag = 'input window, operand 0']
    #allocation3 [shape = 's32[2]{0}', space=sflag, size = 0x8, scoped, tag = 'scoped memory for tpu_custom_call.1']
    #allocation4 [shape = 's32[2]{0}', space=sflag, size = 0x8, scoped, tag = 'scoped memory for tpu_custom_call.1']
    #allocation5 [shape = 'u8[8192]{0}', space=vmem, size = 0x2000, scoped, tag = 'input window, operand 1']
    #allocation6 [shape = 's32[2]{0}', space=sflag, size = 0x8, scoped, tag = 'scoped memory for tpu_custom_call.1']
    #allocation7 [shape = 'u8[4096]{0}', space=vmem, size = 0x1000, scoped, tag = 'input window, operand 2, single buffered']
    #allocation8 [shape = 'u8[8192]{0}', space=vmem, size = 0x2000, scoped, tag = 'output window, operand 0']
    %10 = vsyncpa [#allocation3], 0
    %s11 = scalar_lea.sflag [#allocation3], 1
    %12 = vsyncpa %s11, 0
    %13 = vsyncpa [#allocation6], 0
    %s14 = scalar_lea.sflag [#allocation6], 1
    %15 = vsyncpa %s14, 0
    %16 = vsyncpa [#allocation4], 0
    %s17 = scalar_lea.sflag [#allocation4], 1
    %18 = vsyncpa %s17, 0
    loop: start=0, step=1, limit=4
    $region2: #{tpu_custom_call.1} parent=1 // loop_pre_header
      _
    $region3: #{tpu_custom_call.1} parent=1 // loop_header
      %s20 = sphi 0, %s24
      %p21 = scmp.ge.s32.totalorder %s20, 4
      %s30 = sphi 0, %s32
      %s33 = sphi 0, %s30
      %s34 = sphi 0, %s33
      %s50 = sphi 0, %s34
      %s56 = sphi 0, %s58
      %s59 = sphi 0, %s56
      %s60 = sphi 0, %s59
      %s76 = sphi 0, %s60
      %s80 = sphi 0, %s80
      %s82 = sphi 0, %s80
      %s83 = sphi 0, %s82
      %s97 = sphi 0, %s83
      %s101 = sphi 0, %s101
      %s103 = sphi 0, %s101
      %s104 = sphi 0, %s103
      %s118 = sphi 0, %s104
      %s122 = sphi 0, %s122
      %s124 = sphi 0, %s122
      %s125 = sphi 0, %s124
      %s139 = sphi 0, %s125
      %s145 = sphi 0, %s147
      %s148 = sphi 0, %s145
      %s149 = sphi 0, %s148
      %s165 = sphi 0, %s149
    $region4: #{tpu_custom_call.1} parent=1 // loop_header_branch
      %23 = sbr.rel (%p21) target = $region8
    $region5: #{tpu_custom_call.1} parent=1 // loop_body
      %s25 = ssub.s32 %s20, 1
      %s26 = ssub.s32 %s20, 2
      %s27 = sadd.s32 %s20, 1
      %s28 = ssub.s32 %s20, %s27
      %p29 = scmp.eq.s32.totalorder %s28, 0
      %s31 = sadd.s32 %s30, 1
      %s32 = scalar_select %p29, %s30, %s31
      %p35 = pneg %p29
      %p36 = scmp.eq.s32.totalorder %s20, 1
      %p37 = por %p35, %p36
      %p38 = scmp.ne.s32.totalorder %s30, %s33
      %p39 = scmp.eq.s32.totalorder %s20, 0
      %p40 = por %p38, %p39
      %p41 = scmp.ne.s32.totalorder %s30, %s33
      %p42 = scmp.eq.s32.totalorder %s25, 1
      %p43 = por %p41, %p42
      %p44 = scmp.ne.s32.totalorder %s33, %s34
      %p45 = scmp.eq.s32.totalorder %s25, 0
      %p46 = por %p44, %p45
      %p47 = scmp.ne.s32.totalorder %s33, %s34
      %p48 = scmp.eq.s32.totalorder %s26, 1
      %p49 = por %p47, %p48
      %p51 = scmp.ne.s32.totalorder %s34, %s50
      %p52 = scmp.eq.s32.totalorder %s26, 0
      %p53 = por %p51, %p52
      %s54 = ssub.s32 %s20, %s27
      %p55 = scmp.eq.s32.totalorder %s54, 0
      %s57 = sadd.s32 %s56, 1
      %s58 = scalar_select %p55, %s56, %s57
      %p61 = pneg %p55
      %p62 = scmp.eq.s32.totalorder %s20, 1
      %p63 = por %p61, %p62
      %p64 = scmp.ne.s32.totalorder %s56, %s59
      %p65 = scmp.eq.s32.totalorder %s20, 0
      %p66 = por %p64, %p65
      %p67 = scmp.ne.s32.totalorder %s56, %s59
      %p68 = scmp.eq.s32.totalorder %s25, 1
      %p69 = por %p67, %p68
      %p70 = scmp.ne.s32.totalorder %s59, %s60
      %p71 = scmp.eq.s32.totalorder %s25, 0
      %p72 = por %p70, %p71
      %p73 = scmp.ne.s32.totalorder %s59, %s60
      %p74 = scmp.eq.s32.totalorder %s26, 1
      %p75 = por %p73, %p74
      %p77 = scmp.ne.s32.totalorder %s60, %s76
      %p78 = scmp.eq.s32.totalorder %s26, 0
      %p79 = por %p77, %p78
      %s81 = sadd.s32 %s80, 1
      %p84 = scmp.eq.s32.totalorder %s20, 1
      %p85 = scmp.ne.s32.totalorder %s80, %s82
      %p86 = scmp.eq.s32.totalorder %s20, 0
      %p87 = por %p85, %p86
      %p88 = scmp.ne.s32.totalorder %s80, %s82
      %p89 = scmp.eq.s32.totalorder %s25, 1
      %p90 = por %p88, %p89
      %p91 = scmp.ne.s32.totalorder %s82, %s83
      %p92 = scmp.eq.s32.totalorder %s25, 0
      %p93 = por %p91, %p92
      %p94 = scmp.ne.s32.totalorder %s82, %s83
      %p95 = scmp.eq.s32.totalorder %s26, 1
      %p96 = por %p94, %p95
      %p98 = scmp.ne.s32.totalorder %s83, %s97
      %p99 = scmp.eq.s32.totalorder %s26, 0
      %p100 = por %p98, %p99
      %s102 = sadd.s32 %s101, 1
      %p105 = scmp.eq.s32.totalorder %s20, 1
      %p106 = scmp.ne.s32.totalorder %s101, %s103
      %p107 = scmp.eq.s32.totalorder %s20, 0
      %p108 = por %p106, %p107
      %p109 = scmp.ne.s32.totalorder %s101, %s103
      %p110 = scmp.eq.s32.totalorder %s25, 1
      %p111 = por %p109, %p110
      %p112 = scmp.ne.s32.totalorder %s103, %s104
      %p113 = scmp.eq.s32.totalorder %s25, 0
      %p114 = por %p112, %p113
      %p115 = scmp.ne.s32.totalorder %s103, %s104
      %p116 = scmp.eq.s32.totalorder %s26, 1
      %p117 = por %p115, %p116
      %p119 = scmp.ne.s32.totalorder %s104, %s118
      %p120 = scmp.eq.s32.totalorder %s26, 0
      %p121 = por %p119, %p120
      %s123 = sadd.s32 %s122, 1
      %p126 = scmp.eq.s32.totalorder %s20, 1
      %p127 = scmp.ne.s32.totalorder %s122, %s124
      %p128 = scmp.eq.s32.totalorder %s20, 0
      %p129 = por %p127, %p128
      %p130 = scmp.ne.s32.totalorder %s122, %s124
      %p131 = scmp.eq.s32.totalorder %s25, 1
      %p132 = por %p130, %p131
      %p133 = scmp.ne.s32.totalorder %s124, %s125
      %p134 = scmp.eq.s32.totalorder %s25, 0
      %p135 = por %p133, %p134
      %p136 = scmp.ne.s32.totalorder %s124, %s125
      %p137 = scmp.eq.s32.totalorder %s26, 1
      %p138 = por %p136, %p137
      %p140 = scmp.ne.s32.totalorder %s125, %s139
      %p141 = scmp.eq.s32.totalorder %s26, 0
      %p142 = por %p140, %p141
      %s143 = ssub.s32 %s20, %s27
      %p144 = scmp.eq.s32.totalorder %s143, 0
      %s146 = sadd.s32 %s145, 1
      %s147 = scalar_select %p144, %s145, %s146
      %p150 = pneg %p144
      %p151 = scmp.eq.s32.totalorder %s20, 1
      %p152 = por %p150, %p151
      %p153 = scmp.ne.s32.totalorder %s145, %s148
      %p154 = scmp.eq.s32.totalorder %s20, 0
      %p155 = por %p153, %p154
      %p156 = scmp.ne.s32.totalorder %s145, %s148
      %p157 = scmp.eq.s32.totalorder %s25, 1
      %p158 = por %p156, %p157
      %p159 = scmp.ne.s32.totalorder %s148, %s149
      %p160 = scmp.eq.s32.totalorder %s25, 0
      %p161 = por %p159, %p160
      %p162 = scmp.ne.s32.totalorder %s148, %s149
      %p163 = scmp.eq.s32.totalorder %s26, 1
      %p164 = por %p162, %p163
      %p166 = scmp.ne.s32.totalorder %s149, %s165
      %p167 = scmp.eq.s32.totalorder %s26, 0
      %p168 = por %p166, %p167
      %p169 = scmp.le.s32.totalorder 1, %s20
      %p170 = scmp.lt.s32.totalorder %s20, 3
      %p171 = pnand %p169, %p170
      %p172 = pneg %p171
      // Predicated region
      $region9: #{tpu_custom_call.1} parent=5 // pred_check
        _
      $region10: #{tpu_custom_call.1} parent=5 // pred_check_branch
        %174 = sbr.rel (%p171) target = $region12
      $region11: #{tpu_custom_call.1} parent=5 // pred_region
        %s175 = ssub.s32 %s20, 1
        // Predicated region
        $region13: #{tpu_custom_call.1} parent=11 // pred_check
          %p176 = pneg %p93
        $region14: #{tpu_custom_call.1} parent=11 // pred_check_branch
          %178 = sbr.rel (%p176) target = $region16
        $region15: #{tpu_custom_call.1} parent=11 // pred_region
          %s180 = ssub.s32 128, 128
          %181 = vsyncadd [#allocation6], %s180
          %s183 = sshll.u32 [#allocation7], 4
          %s184 = int_to_ptr.vmem [resolvable:$true] %s183
          %186 = dma.hbm_to_vmem [thread:$0]  %s2, 128, %s184, [#allocation6]
        $region16: #{tpu_custom_call.1} parent=11 // pred_fallthru
          _
        // Predicated region
        $region17: #{tpu_custom_call.1} parent=11 // pred_check
          %p187 = pneg %p114
        $region18: #{tpu_custom_call.1} parent=11 // pred_check_branch
          %189 = sbr.rel (%p187) target = $region20
        $region19: #{tpu_custom_call.1} parent=11 // pred_region
          _
        $region20: #{tpu_custom_call.1} parent=11 // pred_fallthru
          _
        // Predicated region
        $region21: #{tpu_custom_call.1} parent=11 // pred_check
          %p190 = pneg %p135
        $region22: #{tpu_custom_call.1} parent=11 // pred_check_branch
          %192 = sbr.rel (%p190) target = $region24
        $region23: #{tpu_custom_call.1} parent=11 // pred_region
          _
        $region24: #{tpu_custom_call.1} parent=11 // pred_fallthru
          _
      $region12: #{tpu_custom_call.1} parent=5 // pred_fallthru
        _
      %p193 = scmp.lt.s32.totalorder %s20, 2
      // Predicated region
      $region25: #{tpu_custom_call.1} parent=5 // pred_check
        %p194 = pneg %p193
      $region26: #{tpu_custom_call.1} parent=5 // pred_check_branch
        %196 = sbr.rel (%p194) target = $region28
      $region27: #{tpu_custom_call.1} parent=5 // pred_region
        // Predicated region
        $region29: #{tpu_custom_call.1} parent=27 // pred_check
          %p197 = pneg %p40
        $region30: #{tpu_custom_call.1} parent=27 // pred_check_branch
          %199 = sbr.rel (%p197) target = $region32
        $region31: #{tpu_custom_call.1} parent=27 // pred_region
          %s200 = sand.u32 %s30, 1
          %s201 = scalar_lea.sflag [#allocation3], %s200
          %s202 = sand.u32 %s30, 1
          %s203 = smul.addr %s202, 8
          %s204 = scalar_lea.vmem [#allocation2], %s203
          %s206 = ssub.s32 128, 128
          %207 = vsyncadd %s201, %s206
          %s208 = smul.addr %s20, 128
          %s209 = scalar_lea.hbm %s0, %s208
          %s211 = sshll.u32 %s204, 4
          %s212 = int_to_ptr.vmem [resolvable:$true] %s211
          %214 = dma.hbm_to_vmem [thread:$0]  %s209, 128, %s212, %s201
        $region32: #{tpu_custom_call.1} parent=27 // pred_fallthru
          _
        // Predicated region
        $region33: #{tpu_custom_call.1} parent=27 // pred_check
          %p215 = pneg %p66
        $region34: #{tpu_custom_call.1} parent=27 // pred_check_branch
          %217 = sbr.rel (%p215) target = $region36
        $region35: #{tpu_custom_call.1} parent=27 // pred_region
          %s218 = sand.u32 %s20, 1
          %s219 = scalar_lea.sflag [#allocation6], %s218
          %s220 = sand.u32 %s56, 1
          %s221 = smul.addr %s220, 8
          %s222 = scalar_lea.vmem [#allocation5], %s221
          %s224 = ssub.s32 128, 128
          %225 = vsyncadd %s219, %s224
          %s226 = smul.addr %s20, 128
          %s227 = scalar_lea.hbm %s1, %s226
          %s229 = sshll.u32 %s222, 4
          %s230 = int_to_ptr.vmem [resolvable:$true] %s229
          %232 = dma.hbm_to_vmem [thread:$0]  %s227, 128, %s230, %s219
        $region36: #{tpu_custom_call.1} parent=27 // pred_fallthru
          _
      $region28: #{tpu_custom_call.1} parent=5 // pred_fallthru
        _
      %p233 = scmp.le.s32.totalorder 1, %s20
      %p234 = scmp.lt.s32.totalorder %s20, 3
      %p235 = pnand %p233, %p234
      %p236 = pneg %p235
      // Predicated region
      $region37: #{tpu_custom_call.1} parent=5 // pred_check
        _
      $region38: #{tpu_custom_call.1} parent=5 // pred_check_branch
        %238 = sbr.rel (%p235) target = $region40
      $region39: #{tpu_custom_call.1} parent=5 // pred_region
        %s239 = ssub.s32 %s20, 1
        %s240 = sand.u32 %s33, 1
        %s241 = scalar_lea.sflag [#allocation3], %s240
        %s242 = sand.u32 %s33, 1
        %s243 = smul.addr %s242, 8
        %s244 = scalar_lea.vmem [#allocation2], %s243
        // Predicated region
        $region41: #{tpu_custom_call.1} parent=39 // pred_check
          %p245 = pneg %p46
        $region42: #{tpu_custom_call.1} parent=39 // pred_check_branch
          %247 = sbr.rel (%p245) target = $region44
        $region43: #{tpu_custom_call.1} parent=39 // pred_region
          %248 = dma.done %s241, 128
        $region44: #{tpu_custom_call.1} parent=39 // pred_fallthru
          _
        %s249 = sand.u32 %s25, 1
        %s250 = scalar_lea.sflag [#allocation6], %s249
        %s251 = sand.u32 %s59, 1
        %s252 = smul.addr %s251, 8
        %s253 = scalar_lea.vmem [#allocation5], %s252
        // Predicated region
        $region45: #{tpu_custom_call.1} parent=39 // pred_check
          %p254 = pneg %p72
        $region46: #{tpu_custom_call.1} parent=39 // pred_check_branch
          %256 = sbr.rel (%p254) target = $region48
        $region47: #{tpu_custom_call.1} parent=39 // pred_region
          %257 = dma.done %s250, 128
        $region48: #{tpu_custom_call.1} parent=39 // pred_fallthru
          _
        // Predicated region
        $region49: #{tpu_custom_call.1} parent=39 // pred_check
          %p258 = pneg %p93
        $region50: #{tpu_custom_call.1} parent=39 // pred_check_branch
          %260 = sbr.rel (%p258) target = $region52
        $region51: #{tpu_custom_call.1} parent=39 // pred_region
          %261 = dma.done [#allocation6], 128
        $region52: #{tpu_custom_call.1} parent=39 // pred_fallthru
          _
        %s262 = sand.u32 %s33, 1
        %s263 = scalar_lea.sflag [#allocation3], %s262
        %s264 = sand.u32 %s33, 1
        %s265 = smul.addr %s264, 8
        %s266 = scalar_lea.vmem [#allocation2], %s265
        %p267 = pneg %p46
        %p268 = pneg %p43
        %s269 = sand.u32 %s25, 1
        %s270 = scalar_lea.sflag [#allocation6], %s269
        %s271 = sand.u32 %s59, 1
        %s272 = smul.addr %s271, 8
        %s273 = scalar_lea.vmem [#allocation5], %s272
        %p274 = pneg %p72
        %p275 = pneg %p69
        %p276 = pneg %p93
        %p277 = pneg %p90
        %p278 = pneg %p114
        %p279 = pneg %p111
        %p280 = pneg %p135
        %p281 = pneg %p132
        %p282 = pneg %p161
        %p283 = pneg %p158
        %s284 = sand.u32 %s148, 1
        %s285 = scalar_lea.sflag [#allocation4], %s284
        %s286 = sand.u32 %s148, 1
        %s287 = smul.addr %s286, 8
        %s288 = scalar_lea.vmem [#allocation8], %s287
        %v289 = vld [vmem:[%s244] sm:$0xff]
        %v290 = vld [vmem:[%s253] sm:$0xff]
        %v291 = vadd.f32 %v289, %v290
        %v292 = vld [vmem:[#allocation7] sm:$0xff]
        %v293 = vadd.f32 %v291, %v292
        %vm294 = vcmask 261120
        %v295 = vsel %vm294, %v293, 0.0
        %296 = vadd.xlane.f32.xlu0 %v295
        %v297 = vpop.xlane.xlu0 %296
        %v298 = vrcp.pop 32.0
        %v299 = vmul.f32 %v297, %v298
        %v300 = vsub.f32 %v293, %v299
        %v301 = vmul.f32 %v300, %v300
        %v302 = vsel %vm294, %v301, 0.0
        %303 = vadd.xlane.f32.xlu0 %v302
        %v304 = vpop.xlane.xlu0 %303
        %v305 = vmul.f32 %v304, %v298
        %v306 = vadd.f32 %v305, 1e-12
        %v307 = vrsqrt.pop %v306
        %v308 = vmul.f32 %v300, %v307
        %v309 = vld [vmem:[%s3] sm:$0x1]
        %v311 = vlaneseq
        %v312 = vshrl.u32 %v311, 7
        %v313 = vsub.s32 0, %v312
        %v314 = vrot.slane %v309, %v313
        %v316 = vmul.f32 %v308, %v314
        %v317 = vld [vmem:[%s4] sm:$0x1]
        %v319 = vlaneseq
        %v320 = vshrl.u32 %v319, 7
        %v321 = vsub.s32 0, %v320
        %v322 = vrot.slane %v317, %v321
        %v324 = vadd.f32 %v316, %v322
        %325 = vst.msk [vmem:[%s288] sm:$0xff] %vm294, %v324
        %s326 = sand.u32 %s148, 1
        %s327 = scalar_lea.sflag [#allocation4], %s326
        %s328 = sand.u32 %s148, 1
        %s329 = smul.addr %s328, 8
        %s330 = scalar_lea.vmem [#allocation8], %s329
        // Predicated region
        $region53: #{tpu_custom_call.1} parent=39 // pred_check
          %p331 = pneg %p158
        $region54: #{tpu_custom_call.1} parent=39 // pred_check_branch
          %333 = sbr.rel (%p331) target = $region56
        $region55: #{tpu_custom_call.1} parent=39 // pred_region
          %s335 = ssub.s32 128, 128
          %336 = vsyncadd %s327, %s335
          %s337 = smul.addr %s25, 128
          %s338 = scalar_lea.hbm %s5, %s337
          %s340 = sshll.u32 %s330, 4
          %s341 = int_to_ptr.vmem [resolvable:$true] %s340
          %343 = dma.vmem_to_hbm [thread:$0]  %s341, 128, %s338, %s327
        $region56: #{tpu_custom_call.1} parent=39 // pred_fallthru
          _
      $region40: #{tpu_custom_call.1} parent=5 // pred_fallthru
        _
      %p344 = scmp.le.s32.totalorder 2, %s20
      // Predicated region
      $region57: #{tpu_custom_call.1} parent=5 // pred_check
        %p345 = pneg %p344
      $region58: #{tpu_custom_call.1} parent=5 // pred_check_branch
        %347 = sbr.rel (%p345) target = $region60
      $region59: #{tpu_custom_call.1} parent=5 // pred_region
        %s348 = ssub.s32 %s20, 2
        // Predicated region
        $region61: #{tpu_custom_call.1} parent=59 // pred_check
          %p349 = pneg %p164
        $region62: #{tpu_custom_call.1} parent=59 // pred_check_branch
          %351 = sbr.rel (%p349) target = $region64
        $region63: #{tpu_custom_call.1} parent=59 // pred_region
          %s352 = sand.u32 %s149, 1
          %s353 = scalar_lea.sflag [#allocation4], %s352
          %s354 = sand.u32 %s149, 1
          %s355 = smul.addr %s354, 8
          %s356 = scalar_lea.vmem [#allocation8], %s355
          %357 = dma.done %s353, 128
        $region64: #{tpu_custom_call.1} parent=59 // pred_fallthru
          _
      $region60: #{tpu_custom_call.1} parent=5 // pred_fallthru
        _
    $region6: #{tpu_custom_call.1} parent=1 // loop_footer
      %s24 = sadd.s32 1, %s20
    $region7: #{tpu_custom_call.1} parent=1 // loop_footer_branch
      %19 = sbr.rel target = $region3
    $region8: #{tpu_custom_call.1} parent=1 // loop_exit
      _
    %358 = vsyncpa [#allocation3], 1
    %s359 = scalar_lea.sflag [#allocation3], 1
    %360 = vsyncpa %s359, 1
    %361 = vsyncpa [#allocation6], 1
    %s362 = scalar_lea.sflag [#allocation6], 1
    %363 = vsyncpa %s362, 1
    %364 = vsyncpa [#allocation4], 1
    %s365 = scalar_lea.sflag [#allocation4], 1
    %366 = vsyncpa %s365, 1

</llo_original>
